<compile_context>
chip_gen: v6e
topology: v6e:2x2x1
jax: 0.10.0
libtpu: 0.0.40
codegen_flags: <defaults>
</compile_context>

<pallas_src>
import functools

import jax
import jax.numpy as jnp
from jax.experimental import pallas as pl
from jax.experimental.pallas import tpu as pltpu

_LANE = 128      # vreg lane width (last dim)
_SUBLANE = 8     # vreg sublane width (second-to-last dim), f32


def _round_up(n: int, m: int) -> int:
    return ((n + m - 1) // m) * m


def _mlp_kernel(*refs, num_layers: int, sigmoid_output: bool, matmul_dtype):
    # refs = (x_ref, w0, b0, w1, b1, ..., w_{L-1}, b_{L-1}, out_ref)
    x_ref = refs[0]
    out_ref = refs[-1]
    params = refs[1:-1]

    h = x_ref[...]                       # already in matmul_dtype (wrapper cast)
    for i in range(num_layers):
        w = params[2 * i][...]
        b = params[2 * i + 1][...]
        # MXU matmul, f32 accumulation.
        acc = jnp.dot(h, w, preferred_element_type=jnp.float32)
        acc = acc + b.astype(jnp.float32)
        if i < num_layers - 1:
            acc = jnp.maximum(acc, 0.0)  # ReLU on hidden layers only
            h = acc if matmul_dtype is None else acc.astype(matmul_dtype)
        else:
            h = acc                      # final layer output stays f32
    if sigmoid_output:
        h = jax.nn.sigmoid(h)
    out_ref[...] = h.astype(out_ref.dtype)


def mlp_pallas(x, weights, biases, *, sigmoid_output: bool = False, tm: int = 1024,
               matmul_dtype=jnp.bfloat16, vmem_limit_bytes=None,
               min_rows_for_split: int = 256):
    """Fused MLP forward.

    x: (M, input_dim); weights[i]: (d_in, d_out) (pre-transposed vs torch);
    biases[i]: (d_out,) or (1, d_out).  Returns (M, output_dim) in x.dtype.
    """
    num_layers = len(weights)
    assert num_layers >= 1 and len(biases) == num_layers
    M, input_dim = x.shape
    output_dim = weights[-1].shape[1]

    dims_in = [w.shape[0] for w in weights]
    dims_out = [w.shape[1] for w in weights]
    assert dims_in[0] == input_dim
    for a, b in zip(dims_out[:-1], dims_in[1:]):
        assert a == b, "layer dims must chain"

    op_dtype = x.dtype if matmul_dtype is None else jnp.dtype(matmul_dtype)
    # Sub-32-bit dtypes pack along sublanes -> align row tiles accordingly.
    row_align = _SUBLANE * max(1, 4 // jnp.dtype(op_dtype).itemsize)

    # ---- Row tiling -------------------------------------------------------
    tm = max(row_align, _round_up(tm, row_align))
    m8 = _round_up(M, row_align)
    if m8 > tm:
        # Multi-tile: keep the step count even so v7x's two TCs stay balanced.
        nsteps = pl.cdiv(m8, tm)
        if nsteps % 2:
            nsteps += 1
        tm_eff = _round_up(pl.cdiv(m8, nsteps), row_align)
    elif m8 >= 2 * min_rows_for_split:
        # Fits one tile but is big enough to split across v7x's two TCs.
        tm_eff = _round_up(pl.cdiv(m8, 2), row_align)
    else:
        tm_eff = m8                      # tiny input: single grid step
    m_pad = _round_up(M, tm_eff)
    grid = (m_pad // tm_eff,)

    # ---- Operand prep (fused pad + cast; skip pad when not needed) --------
    if m_pad == M:
        x_in = x if x.dtype == op_dtype else x.astype(op_dtype)
    else:
        x_in = jnp.pad(x, ((0, m_pad - M), (0, 0))).astype(op_dtype)

    flat_params = []
    for li in range(num_layers):
        w = weights[li].astype(op_dtype)                       # bf16 operands
        b = jnp.reshape(biases[li], (1, -1)).astype(jnp.float32)  # f32 bias add
        flat_params += [w, b]

    # ---- Specs: no feature-dim padding; blocks span full param arrays -----
    in_specs = [pl.BlockSpec((tm_eff, input_dim), lambda i: (i, 0))]
    for li in range(num_layers):
        d_in, d_out = dims_in[li], dims_out[li]
        # Grid-invariant weight/bias blocks (constant index map -> fetched once).
        in_specs.append(pl.BlockSpec((d_in, d_out), lambda i: (0, 0)))
        in_specs.append(pl.BlockSpec((1, d_out), lambda i: (0, 0)))

    out_specs = pl.BlockSpec((tm_eff, output_dim), lambda i: (i, 0))
    out_shape = jax.ShapeDtypeStruct((m_pad, output_dim), x.dtype)

    # ---- Cost estimate so XLA can schedule around the custom call ---------
    flops = 2 * m_pad * sum(k * n for k, n in zip(dims_in, dims_out))
    transcendentals = m_pad * output_dim if sigmoid_output else 0
    param_bytes = sum(p.size * p.dtype.itemsize for p in flat_params)
    bytes_accessed = (m_pad * input_dim * jnp.dtype(op_dtype).itemsize
                      + param_bytes
                      + m_pad * output_dim * jnp.dtype(x.dtype).itemsize)

    kernel = functools.partial(_mlp_kernel, num_layers=num_layers,
                               sigmoid_output=sigmoid_output,
                               matmul_dtype=(None if matmul_dtype is None
                                             else op_dtype))

    compiler_kwargs = dict(dimension_semantics=("parallel",))
    if vmem_limit_bytes is not None:
        compiler_kwargs["vmem_limit_bytes"] = vmem_limit_bytes

    out_p = pl.pallas_call(
        kernel,
        out_shape=out_shape,
        grid_spec=pltpu.PrefetchScalarGridSpec(
            num_scalar_prefetch=0,
            grid=grid,
            in_specs=in_specs,
            out_specs=out_specs,
        ),
        compiler_params=pltpu.CompilerParams(**compiler_kwargs),
        cost_estimate=pl.CostEstimate(flops=flops,
                                      transcendentals=transcendentals,
                                      bytes_accessed=bytes_accessed),
    )(x_in, *flat_params)

    return out_p if m_pad == M else out_p[:M]


def init_mlp_params(key, input_dim, hidden_dim, output_dim, num_layers,
                    dtype=jnp.float32):
    """Init mirroring torch.nn.Linear defaults (uniform +/- 1/sqrt(fan_in)).
    Weights stored as (in, out)."""
    h = [hidden_dim] * (num_layers - 1)
    dims_in = [input_dim] + h
    dims_out = h + [output_dim]
    weights, biases = [], []
    for d_in, d_out in zip(dims_in, dims_out):
        key, kw, kb = jax.random.split(key, 3)
        bound = 1.0 / (d_in ** 0.5)
        weights.append(jax.random.uniform(kw, (d_in, d_out), dtype, -bound, bound))
        biases.append(jax.random.uniform(kb, (1, d_out), dtype, -bound, bound))
    return weights, biases


def mlp_reference(x, weights, biases, sigmoid_output=False, matmul_dtype=None):
    h = x
    n = len(weights)
    for i, (w, b) in enumerate(zip(weights, biases)):
        if matmul_dtype is not None:
            acc = jnp.dot(h.astype(matmul_dtype), w.astype(matmul_dtype),
                          preferred_element_type=jnp.float32)
        else:
            acc = jnp.dot(h, w, preferred_element_type=jnp.float32)
        acc = acc + jnp.reshape(b, (1, -1)).astype(jnp.float32)
        if i < n - 1:
            acc = jnp.maximum(acc, 0.0)
        h = acc
    if sigmoid_output:
        h = jax.nn.sigmoid(h)
    return h.astype(x.dtype)


if __name__ == "__main__":
    key = jax.random.PRNGKey(0)

    # Small shapes consistent with the module: 32 -> 64 -> 64 -> 16, sigmoid.
    input_dim, hidden_dim, output_dim, num_layers = 32, 64, 16, 3
    sigmoid_output = True

    key, kparam = jax.random.split(key)
    weights, biases = init_mlp_params(
        kparam, input_dim, hidden_dim, output_dim, num_layers
    )

    # M=16  : tiny case -> single grid step, no row pad (cast only).
    # M=600 : fits one tile but splits into 2 steps (v7x TC balance), 8 pad rows.
    # M=2048: multi-tile path, tm=1024 -> 2 steps, no row pad.
    for M in (16, 600, 2048):
        key, kx = jax.random.split(key)
        x = jax.random.normal(kx, (M, input_dim), jnp.float32)

        out = mlp_pallas(x, weights, biases, sigmoid_output=sigmoid_output)
        out = jax.block_until_ready(out)
        assert out.shape == (M, output_dim)

        # Reference with matching bf16-operand / f32-accumulate precision.
        ref_bf16 = mlp_reference(x, weights, biases,
                                 sigmoid_output=sigmoid_output,
                                 matmul_dtype=jnp.bfloat16)
        assert jnp.allclose(out, ref_bf16, atol=1e-2, rtol=1e-2), \
            float(jnp.max(jnp.abs(out - ref_bf16)))

        # Sanity check against the full-f32 reference (bf16 MXU tolerance).
        ref_f32 = mlp_reference(x, weights, biases,
                                sigmoid_output=sigmoid_output)
        assert jnp.allclose(out, ref_f32, atol=5e-2, rtol=5e-2), \
            float(jnp.max(jnp.abs(out - ref_f32)))

    print("KERNEL_OK")
</pallas_src>

<mosaic_0001>
module attributes {stable_mosaic.version = 11 : i64} {
  func.func @_mlp_kernel(%arg0: i32, %arg1: memref<16x32xbf16, #tpu.memory_space<vmem>>, %arg2: memref<32x64xbf16, #tpu.memory_space<vmem>>, %arg3: memref<1x64xf32, #tpu.memory_space<vmem>>, %arg4: memref<64x64xbf16, #tpu.memory_space<vmem>>, %arg5: memref<1x64xf32, #tpu.memory_space<vmem>>, %arg6: memref<64x16xbf16, #tpu.memory_space<vmem>>, %arg7: memref<1x16xf32, #tpu.memory_space<vmem>>, %arg8: memref<16x16xf32, #tpu.memory_space<vmem>>) attributes {dimension_semantics = [#tpu.dimension_semantics<parallel>], iteration_bounds = array<i64: 1>, scalar_prefetch = 0 : i64, scratch_operands = 0 : i64, tpu.core_type = #tpu.core_type<tc>, window_params = [{transform_indices = @transform_0, window_bounds = array<i64: 16, 32>}, {pipeline_mode = #tpu.pipeline_mode<synchronous>, transform_indices = @transform_1, window_bounds = array<i64: 32, 64>}, {pipeline_mode = #tpu.pipeline_mode<synchronous>, transform_indices = @transform_2, window_bounds = array<i64: 1, 64>}, {pipeline_mode = #tpu.pipeline_mode<synchronous>, transform_indices = @transform_3, window_bounds = array<i64: 64, 64>}, {pipeline_mode = #tpu.pipeline_mode<synchronous>, transform_indices = @transform_4, window_bounds = array<i64: 1, 64>}, {pipeline_mode = #tpu.pipeline_mode<synchronous>, transform_indices = @transform_5, window_bounds = array<i64: 64, 16>}, {pipeline_mode = #tpu.pipeline_mode<synchronous>, transform_indices = @transform_6, window_bounds = array<i64: 1, 16>}, {transform_indices = @transform_7, window_bounds = array<i64: 16, 16>}]} {
    %c0 = arith.constant 0 : index
    %c0_0 = arith.constant 0 : index
    %0 = vector.load %arg1[%c0, %c0_0] : memref<16x32xbf16, #tpu.memory_space<vmem>>, vector<16x32xbf16>
    %c0_1 = arith.constant 0 : index
    %c0_2 = arith.constant 0 : index
    %1 = vector.load %arg2[%c0_1, %c0_2] : memref<32x64xbf16, #tpu.memory_space<vmem>>, vector<32x64xbf16>
    %c0_3 = arith.constant 0 : index
    %c0_4 = arith.constant 0 : index
    %2 = vector.load %arg3[%c0_3, %c0_4] : memref<1x64xf32, #tpu.memory_space<vmem>>, vector<1x64xf32>
    %cst = arith.constant dense<0.000000e+00> : vector<16x64xf32>
    %3 = tpu.matmul %0, %1, %cst {dimension_numbers = #tpu.dot_dimension_numbers<[1], [0], [0], [1], [0, 0, 1, 1], [], []>} : vector<16x32xbf16>, vector<32x64xbf16>, vector<16x64xf32> -> vector<16x64xf32>
    %4 = vector.broadcast %2 : vector<1x64xf32> to vector<16x64xf32>
    %5 = arith.addf %3, %4 : vector<16x64xf32>
    %cst_5 = arith.constant 0.000000e+00 : f32
    %6 = vector.broadcast %cst_5 : f32 to vector<16x64xf32>
    %7 = arith.maximumf %5, %6 : vector<16x64xf32>
    %8 = arith.truncf %7 : vector<16x64xf32> to vector<16x64xbf16>
    %c0_6 = arith.constant 0 : index
    %c0_7 = arith.constant 0 : index
    %9 = vector.load %arg4[%c0_6, %c0_7] : memref<64x64xbf16, #tpu.memory_space<vmem>>, vector<64x64xbf16>
    %c0_8 = arith.constant 0 : index
    %c0_9 = arith.constant 0 : index
    %10 = vector.load %arg5[%c0_8, %c0_9] : memref<1x64xf32, #tpu.memory_space<vmem>>, vector<1x64xf32>
    %cst_10 = arith.constant dense<0.000000e+00> : vector<16x64xf32>
    %11 = tpu.matmul %8, %9, %cst_10 {dimension_numbers = #tpu.dot_dimension_numbers<[1], [0], [0], [1], [0, 0, 1, 1], [], []>} : vector<16x64xbf16>, vector<64x64xbf16>, vector<16x64xf32> -> vector<16x64xf32>
    %12 = vector.broadcast %10 : vector<1x64xf32> to vector<16x64xf32>
    %13 = arith.addf %11, %12 : vector<16x64xf32>
    %cst_11 = arith.constant 0.000000e+00 : f32
    %14 = vector.broadcast %cst_11 : f32 to vector<16x64xf32>
    %15 = arith.maximumf %13, %14 : vector<16x64xf32>
    %16 = arith.truncf %15 : vector<16x64xf32> to vector<16x64xbf16>
    %c0_12 = arith.constant 0 : index
    %c0_13 = arith.constant 0 : index
    %17 = vector.load %arg6[%c0_12, %c0_13] : memref<64x16xbf16, #tpu.memory_space<vmem>>, vector<64x16xbf16>
    %c0_14 = arith.constant 0 : index
    %c0_15 = arith.constant 0 : index
    %18 = vector.load %arg7[%c0_14, %c0_15] : memref<1x16xf32, #tpu.memory_space<vmem>>, vector<1x16xf32>
    %cst_16 = arith.constant dense<0.000000e+00> : vector<16x16xf32>
    %19 = tpu.matmul %16, %17, %cst_16 {dimension_numbers = #tpu.dot_dimension_numbers<[1], [0], [0], [1], [0, 0, 1, 1], [], []>} : vector<16x64xbf16>, vector<64x16xbf16>, vector<16x16xf32> -> vector<16x16xf32>
    %20 = vector.broadcast %18 : vector<1x16xf32> to vector<16x16xf32>
    %21 = arith.addf %19, %20 : vector<16x16xf32>
    %22 = arith.negf %21 : vector<16x16xf32>
    %23 = math.exp %22 : vector<16x16xf32>
    %cst_17 = arith.constant 1.000000e+00 : f32
    %24 = vector.broadcast %cst_17 : f32 to vector<16x16xf32>
    %25 = arith.addf %24, %23 : vector<16x16xf32>
    %26 = arith.divf %24, %25 : vector<16x16xf32>
    %c0_18 = arith.constant 0 : index
    %c0_19 = arith.constant 0 : index
    %27 = vector.load %arg8[%c0_18, %c0_19] : memref<16x16xf32, #tpu.memory_space<vmem>>, vector<16x16xf32>
    tpu.vector_store %arg8[%c0_18, %c0_19], %26 {strides = array<i32>} : memref<16x16xf32, #tpu.memory_space<vmem>>, vector<16x16xf32>,
    return
  }
  func.func @transform_0(%arg0: i32) -> (i32, i32) {
    %c0_i32 = arith.constant 0 : i32
    %c0_i32_0 = arith.constant 0 : i32
    return %arg0, %c0_i32 : i32, i32
  }
  func.func @transform_1(%arg0: i32) -> (i32, i32) {
    %c0_i32 = arith.constant 0 : i32
    %c0_i32_0 = arith.constant 0 : i32
    %c0_i32_1 = arith.constant 0 : i32
    return %c0_i32, %c0_i32_0 : i32, i32
  }
  func.func @transform_2(%arg0: i32) -> (i32, i32) {
    %c0_i32 = arith.constant 0 : i32
    %c0_i32_0 = arith.constant 0 : i32
    %c0_i32_1 = arith.constant 0 : i32
    return %c0_i32, %c0_i32_0 : i32, i32
  }
  func.func @transform_3(%arg0: i32) -> (i32, i32) {
    %c0_i32 = arith.constant 0 : i32
    %c0_i32_0 = arith.constant 0 : i32
    %c0_i32_1 = arith.constant 0 : i32
    return %c0_i32, %c0_i32_0 : i32, i32
  }
  func.func @transform_4(%arg0: i32) -> (i32, i32) {
    %c0_i32 = arith.constant 0 : i32
    %c0_i32_0 = arith.constant 0 : i32
    %c0_i32_1 = arith.constant 0 : i32
    return %c0_i32, %c0_i32_0 : i32, i32
  }
  func.func @transform_5(%arg0: i32) -> (i32, i32) {
    %c0_i32 = arith.constant 0 : i32
    %c0_i32_0 = arith.constant 0 : i32
    %c0_i32_1 = arith.constant 0 : i32
    return %c0_i32, %c0_i32_0 : i32, i32
  }
  func.func @transform_6(%arg0: i32) -> (i32, i32) {
    %c0_i32 = arith.constant 0 : i32
    %c0_i32_0 = arith.constant 0 : i32
    %c0_i32_1 = arith.constant 0 : i32
    return %c0_i32, %c0_i32_0 : i32, i32
  }
  func.func @transform_7(%arg0: i32) -> (i32, i32) {
    %c0_i32 = arith.constant 0 : i32
    %c0_i32_0 = arith.constant 0 : i32
    return %arg0, %c0_i32 : i32, i32
  }
}

</mosaic_0001>

<llo_original>
// kernel: tpu_custom_call.1
$region0: #{tpu_custom_call.1}
  #allocation0 [shape = 'u32[]', space=smem, size = 0x4, offset = 0x4, fixed_abs, tag = 'smem constant byte address 0x4 - core index']
  #allocation1 [shape = 'u32[144,128]{1,0:T(1,128)}', space=vmem, size = 0x12000, scoped, tag = 'internal scratch']
  %s0 = inlined_call_operand.vmem [shape: bf16[16,32], index: 0, kind: input, shape index: {}]
  %s1 = inlined_call_operand.hbm [shape: bf16[32,64], index: 1, kind: input, shape index: {}]
  %s2 = inlined_call_operand.vmem [shape: f32[1,64], index: 2, kind: input, shape index: {}]
  %s3 = inlined_call_operand.vmem [shape: bf16[64,64], index: 3, kind: input, shape index: {}]
  %s4 = inlined_call_operand.hbm [shape: f32[1,64], index: 4, kind: input, shape index: {}]
  %s5 = inlined_call_operand.vmem [shape: bf16[64,16], index: 5, kind: input, shape index: {}]
  %s6 = inlined_call_operand.vmem [shape: f32[1,16], index: 6, kind: input, shape index: {}]
  %s7 = inlined_call_operand.hbm [shape: f32[16,16], index: 7, kind: output, shape index: {}]
  %s8 = sld [smem:[#allocation0]]
  $region46: #{tpu_custom_call.1} parent=0
    _
  %s10 = ssub.s32 1, %s8
  %s11 = scalar_select 0, %s10, %s8
  $region1: #{tpu_custom_call.1} parent=0
    #allocation2 [shape = 'u8[8192]{0}', space=vmem, size = 0x2000, scoped, tag = 'input window, operand 1, single buffered']
    #allocation3 [shape = 's32[1]{0}', space=sflag, size = 0x4, scoped, tag = 'scoped memory for tpu_custom_call.1']
    #allocation4 [shape = 's32[1]{0}', space=sflag, size = 0x4, scoped, tag = 'scoped memory for tpu_custom_call.1']
    #allocation5 [shape = 'u8[512]{0}', space=vmem, size = 0x400, scoped, tag = 'input window, operand 4, single buffered']
    #allocation6 [shape = 's32[1]{0}', space=sflag, size = 0x4, scoped, tag = 'scoped memory for tpu_custom_call.1']
    #allocation7 [shape = 'u8[8192]{0}', space=vmem, size = 0x2000, scoped, tag = 'output window, operand 0, single buffered']
    %12 = vsyncpa [#allocation3], 0
    %13 = vsyncpa [#allocation6], 0
    %14 = vsyncpa [#allocation4], 0
    // Predicated region
    $region2: #{tpu_custom_call.1} parent=1 // pred_check
      _
    $region3: #{tpu_custom_call.1} parent=1 // pred_check_branch
      %16 = sbr.rel (0) target = $region5
    $region4: #{tpu_custom_call.1} parent=1 // pred_region
      _
    $region5: #{tpu_custom_call.1} parent=1 // pred_fallthru
      _
    // Predicated region
    $region6: #{tpu_custom_call.1} parent=1 // pred_check
      _
    $region7: #{tpu_custom_call.1} parent=1 // pred_check_branch
      %18 = sbr.rel (0) target = $region9
    $region8: #{tpu_custom_call.1} parent=1 // pred_region
      %s20 = ssub.s32 256, 256
      %21 = vsyncadd [#allocation3], %s20
      %s22 = sshll.u32 [#allocation2], 4
      %s23 = int_to_ptr.vmem [resolvable:$true] %s22
      %28 = dma.hbm_to_vmem [thread:$0]  %s1, 256, %s23, [#allocation3], 64, 64, 4
    $region9: #{tpu_custom_call.1} parent=1 // pred_fallthru
      _
    // Predicated region
    $region10: #{tpu_custom_call.1} parent=1 // pred_check
      _
    $region11: #{tpu_custom_call.1} parent=1 // pred_check_branch
      %30 = sbr.rel (0) target = $region13
    $region12: #{tpu_custom_call.1} parent=1 // pred_region
      _
    $region13: #{tpu_custom_call.1} parent=1 // pred_fallthru
      _
    // Predicated region
    $region14: #{tpu_custom_call.1} parent=1 // pred_check
      _
    $region15: #{tpu_custom_call.1} parent=1 // pred_check_branch
      %32 = sbr.rel (0) target = $region17
    $region16: #{tpu_custom_call.1} parent=1 // pred_region
      _
    $region17: #{tpu_custom_call.1} parent=1 // pred_fallthru
      _
    // Predicated region
    $region18: #{tpu_custom_call.1} parent=1 // pred_check
      _
    $region19: #{tpu_custom_call.1} parent=1 // pred_check_branch
      %34 = sbr.rel (0) target = $region21
    $region20: #{tpu_custom_call.1} parent=1 // pred_region
      %s36 = ssub.s32 16, 16
      %37 = vsyncadd [#allocation6], %s36
      %s39 = sshll.u32 [#allocation5], 4
      %s40 = int_to_ptr.vmem [resolvable:$true] %s39
      %42 = dma.hbm_to_vmem [thread:$0]  %s4, 16, %s40, [#allocation6]
    $region21: #{tpu_custom_call.1} parent=1 // pred_fallthru
      _
    // Predicated region
    $region22: #{tpu_custom_call.1} parent=1 // pred_check
      _
    $region23: #{tpu_custom_call.1} parent=1 // pred_check_branch
      %44 = sbr.rel (0) target = $region25
    $region24: #{tpu_custom_call.1} parent=1 // pred_region
      _
    $region25: #{tpu_custom_call.1} parent=1 // pred_fallthru
      _
    // Predicated region
    $region26: #{tpu_custom_call.1} parent=1 // pred_check
      _
    $region27: #{tpu_custom_call.1} parent=1 // pred_check_branch
      %46 = sbr.rel (0) target = $region29
    $region28: #{tpu_custom_call.1} parent=1 // pred_region
      _
    $region29: #{tpu_custom_call.1} parent=1 // pred_fallthru
      _
    // Predicated region
    $region30: #{tpu_custom_call.1} parent=1 // pred_check
      _
    $region31: #{tpu_custom_call.1} parent=1 // pred_check_branch
      %48 = sbr.rel (0) target = $region33
    $region32: #{tpu_custom_call.1} parent=1 // pred_region
      %49 = dma.done [#allocation3], 256
    $region33: #{tpu_custom_call.1} parent=1 // pred_fallthru
      _
    // Predicated region
    $region34: #{tpu_custom_call.1} parent=1 // pred_check
      _
    $region35: #{tpu_custom_call.1} parent=1 // pred_check_branch
      %51 = sbr.rel (0) target = $region37
    $region36: #{tpu_custom_call.1} parent=1 // pred_region
      %52 = dma.done [#allocation6], 16
    $region37: #{tpu_custom_call.1} parent=1 // pred_fallthru
      _
    %v54 = vld [vmem:[%s0] sm:$0xf]
    %v55 = vld [vmem:[%s0 + $0x4] sm:$0xf]
    %v56 = vld [vmem:[#allocation2] sm:$0xf]
    %v57 = vld [vmem:[#allocation2 + $0x4] sm:$0xf]
    %v58 = vld [vmem:[#allocation2 + $0x8] sm:$0xf]
    %v59 = vld [vmem:[#allocation2 + $0xc] sm:$0xf]
    %v60 = vld [vmem:[%s2] sm:$0x1]
    %v62 = vlaneseq
    %v63 = vshrl.u32 %v62, 7
    %v64 = vsub.s32 0, %v63
    %v65 = vrot.slane %v60, %v64
    %v69 = vunpack.c.l.b16 %v54
    %v70 = vunpack.c.l.b16 %v55
    %v71 = vpack.c.b16 %v70, %v69
    %v76 = vunpack.c.l.b16 %v56
    %v77 = vunpack.c.l.b16 %v57
    %v78 = vunpack.c.l.b16 %v58
    %v79 = vunpack.c.l.b16 %v59
    %v80 = vpack.c.b16 %v77, %v76
    %v81 = vpack.c.b16 %v79, %v78
    %vm84 = vcmask 261120
    %v86 = vsel %vm84, %v71, 0
    %88 = vmatprep.subr.bf16.mxu0 0
    %89 = vmatpush1.bf16.msra.mxu0 0
    %90 = vmatprep.subr.bf16.mxu0 0
    %91 = vmatpush1.bf16.msra.mxu0 0
    %92 = vmatprep.subr.bf16.mxu0 0
    %93 = vmatpush1.bf16.msra.mxu0 0
    %94 = vmatprep.subr.bf16.mxu0 0
    %95 = vmatpush1.bf16.msra.mxu0 0
    %96 = vmatprep.subr.bf16.mxu0 0
    %97 = vmatpush1.bf16.msra.mxu0 0
    %98 = vmatprep.subr.bf16.mxu0 0
    %99 = vmatpush1.bf16.msra.mxu0 0
    %100 = vmatprep.subr.bf16.mxu0 0
    %101 = vmatpush1.bf16.msra.mxu0 %v81
    %102 = vmatprep.subr.bf16.mxu0 0
    %103 = vmatpush1.bf16.msra.mxu0 %v80
    %104 = vmatprep.subr.bf16.mxu0 0
    %105 = vmatpush2.bf16.msra.mxu0 0
    %106 = vmatprep.subr.bf16.mxu0 0
    %107 = vmatpush2.bf16.msra.mxu0 0
    %108 = vmatprep.subr.bf16.mxu0 0
    %109 = vmatpush2.bf16.msra.mxu0 0
    %110 = vmatprep.subr.bf16.mxu0 0
    %111 = vmatpush2.bf16.msra.mxu0 0
    %112 = vmatprep.subr.bf16.mxu0 0
    %113 = vmatpush2.bf16.msra.mxu0 0
    %114 = vmatprep.subr.bf16.mxu0 0
    %115 = vmatpush2.bf16.msra.mxu0 0
    %116 = vmatprep.subr.bf16.mxu0 0
    %117 = vmatpush2.bf16.msra.mxu0 0
    %118 = vmatprep.subr.bf16.mxu0 0
    %119 = vmatpush2.bf16.msra.mxu0 0
    %120 = vmatprep.mubr.bf16.mxu0 0
    %121 = vmatmul.mubr.bf16.gmra.mxu0 %v86
    %v122 = vpop.f32.mrf.mxu0
    %v123 = vadd.f32 %v65, %v122
    %v124 = vpop.f32.mrf.mxu0
    %v125 = vpop.f32.mrf.mxu0
    %v126 = vadd.f32 %v65, %v125
    %v127 = vpop.f32.mrf.mxu0
    %128 = vdwg.mxu0
    %v129 = vmax.f32 %v123, 0.0
    %v130 = vmax.f32 %v126, 0.0
    %v131 = vpack.c.bf16 %v130, %v129
    %v132 = vld [vmem:[%s3] sm:$0xf]
    %v133 = vld [vmem:[%s3 + $0x4] sm:$0xf]
    %v134 = vld [vmem:[%s3 + $0x8] sm:$0xf]
    %v135 = vld [vmem:[%s3 + $0xc] sm:$0xf]
    %v136 = vld [vmem:[%s3 + $0x10] sm:$0xf]
    %v137 = vld [vmem:[%s3 + $0x14] sm:$0xf]
    %v138 = vld [vmem:[%s3 + $0x18] sm:$0xf]
    %v139 = vld [vmem:[%s3 + $0x1c] sm:$0xf]
    %v140 = vld [vmem:[#allocation5] sm:$0x1]
    %v142 = vlaneseq
    %v143 = vshrl.u32 %v142, 7
    %v144 = vsub.s32 0, %v143
    %v145 = vrot.slane %v140, %v144
    %v155 = vunpack.c.l.b16 %v132
    %v156 = vunpack.c.l.b16 %v133
    %v157 = vunpack.c.l.b16 %v134
    %v158 = vunpack.c.l.b16 %v135
    %v159 = vunpack.c.l.b16 %v136
    %v160 = vunpack.c.l.b16 %v137
    %v161 = vunpack.c.l.b16 %v138
    %v162 = vunpack.c.l.b16 %v139
    %v163 = vpack.c.b16 %v156, %v155
    %v164 = vpack.c.b16 %v158, %v157
    %v165 = vpack.c.b16 %v160, %v159
    %v166 = vpack.c.b16 %v162, %v161
    %vm171 = vcmask 523264
    %v173 = vsel %vm171, %v131, 0
    %175 = vmatprep.subr.bf16.mxu0 0
    %176 = vmatpush1.bf16.msra.mxu0 0
    %177 = vmatprep.subr.bf16.mxu0 0
    %178 = vmatpush1.bf16.msra.mxu0 0
    %179 = vmatprep.subr.bf16.mxu0 0
    %180 = vmatpush1.bf16.msra.mxu0 0
    %181 = vmatprep.subr.bf16.mxu0 0
    %182 = vmatpush1.bf16.msra.mxu0 0
    %183 = vmatprep.subr.bf16.mxu0 0
    %184 = vmatpush1.bf16.msra.mxu0 %v166
    %185 = vmatprep.subr.bf16.mxu0 0
    %186 = vmatpush1.bf16.msra.mxu0 %v165
    %187 = vmatprep.subr.bf16.mxu0 0
    %188 = vmatpush1.bf16.msra.mxu0 %v164
    %189 = vmatprep.subr.bf16.mxu0 0
    %190 = vmatpush1.bf16.msra.mxu0 %v163
    %191 = vmatprep.subr.bf16.mxu0 0
    %192 = vmatpush2.bf16.msra.mxu0 0
    %193 = vmatprep.subr.bf16.mxu0 0
    %194 = vmatpush2.bf16.msra.mxu0 0
    %195 = vmatprep.subr.bf16.mxu0 0
    %196 = vmatpush2.bf16.msra.mxu0 0
    %197 = vmatprep.subr.bf16.mxu0 0
    %198 = vmatpush2.bf16.msra.mxu0 0
    %199 = vmatprep.subr.bf16.mxu0 0
    %200 = vmatpush2.bf16.msra.mxu0 0
    %201 = vmatprep.subr.bf16.mxu0 0
    %202 = vmatpush2.bf16.msra.mxu0 0
    %203 = vmatprep.subr.bf16.mxu0 0
    %204 = vmatpush2.bf16.msra.mxu0 0
    %205 = vmatprep.subr.bf16.mxu0 0
    %206 = vmatpush2.bf16.msra.mxu0 0
    %207 = vmatprep.mubr.bf16.mxu0 0
    %208 = vmatmul.mubr.bf16.gmra.mxu0 %v173
    %v209 = vpop.f32.mrf.mxu0
    %v210 = vadd.f32 %v145, %v209
    %v211 = vpop.f32.mrf.mxu0
    %v212 = vpop.f32.mrf.mxu0
    %v213 = vadd.f32 %v145, %v212
    %v214 = vpop.f32.mrf.mxu0
    %215 = vdwg.mxu0
    %v216 = vmax.f32 %v210, 0.0
    %v217 = vmax.f32 %v213, 0.0
    %v218 = vpack.c.bf16 %v217, %v216
    %v219 = vld [vmem:[%s5] sm:$0xf]
    %v220 = vld [vmem:[%s5 + $0x4] sm:$0xf]
    %v221 = vld [vmem:[%s5 + $0x8] sm:$0xf]
    %v222 = vld [vmem:[%s5 + $0xc] sm:$0xf]
    %v223 = vld [vmem:[%s5 + $0x10] sm:$0xf]
    %v224 = vld [vmem:[%s5 + $0x14] sm:$0xf]
    %v225 = vld [vmem:[%s5 + $0x18] sm:$0xf]
    %v226 = vld [vmem:[%s5 + $0x1c] sm:$0xf]
    %v227 = vld [vmem:[%s6] sm:$0x1]
    %v229 = vlaneseq
    %v230 = vshrl.u32 %v229, 7
    %v231 = vsub.s32 0, %v230
    %v232 = vrot.slane %v227, %v231
    %v242 = vunpack.c.l.b16 %v219
    %v243 = vunpack.c.l.b16 %v220
    %v244 = vunpack.c.l.b16 %v221
    %v245 = vunpack.c.l.b16 %v222
    %v246 = vunpack.c.l.b16 %v223
    %v247 = vunpack.c.l.b16 %v224
    %v248 = vunpack.c.l.b16 %v225
    %v249 = vunpack.c.l.b16 %v226
    %v250 = vpack.c.b16 %v243, %v242
    %v251 = vpack.c.b16 %v245, %v244
    %v252 = vpack.c.b16 %v247, %v246
    %v253 = vpack.c.b16 %v249, %v248
    %v259 = vsel %vm171, %v218, 0
    %261 = vmatprep.subr.bf16.mxu0 0
    %262 = vmatpush1.bf16.msra.mxu0 0
    %263 = vmatprep.subr.bf16.mxu0 0
    %264 = vmatpush1.bf16.msra.mxu0 0
    %265 = vmatprep.subr.bf16.mxu0 0
    %266 = vmatpush1.bf16.msra.mxu0 0
    %267 = vmatprep.subr.bf16.mxu0 0
    %268 = vmatpush1.bf16.msra.mxu0 0
    %269 = vmatprep.subr.bf16.mxu0 0
    %270 = vmatpush1.bf16.msra.mxu0 %v253
    %271 = vmatprep.subr.bf16.mxu0 0
    %272 = vmatpush1.bf16.msra.mxu0 %v252
    %273 = vmatprep.subr.bf16.mxu0 0
    %274 = vmatpush1.bf16.msra.mxu0 %v251
    %275 = vmatprep.subr.bf16.mxu0 0
    %276 = vmatpush1.bf16.msra.mxu0 %v250
    %277 = vmatprep.subr.bf16.mxu0 0
    %278 = vmatpush2.bf16.msra.mxu0 0
    %279 = vmatprep.subr.bf16.mxu0 0
    %280 = vmatpush2.bf16.msra.mxu0 0
    %281 = vmatprep.subr.bf16.mxu0 0
    %282 = vmatpush2.bf16.msra.mxu0 0
    %283 = vmatprep.subr.bf16.mxu0 0
    %284 = vmatpush2.bf16.msra.mxu0 0
    %285 = vmatprep.subr.bf16.mxu0 0
    %286 = vmatpush2.bf16.msra.mxu0 0
    %287 = vmatprep.subr.bf16.mxu0 0
    %288 = vmatpush2.bf16.msra.mxu0 0
    %289 = vmatprep.subr.bf16.mxu0 0
    %290 = vmatpush2.bf16.msra.mxu0 0
    %291 = vmatprep.subr.bf16.mxu0 0
    %292 = vmatpush2.bf16.msra.mxu0 0
    %293 = vmatprep.mubr.bf16.mxu0 0
    %294 = vmatmul.mubr.bf16.gmra.mxu0 %v259
    %v295 = vpop.f32.mrf.mxu0
    %v296 = vadd.f32 %v232, %v295
    %v297 = vpop.f32.mrf.mxu0
    %v298 = vpop.f32.mrf.mxu0
    %v299 = vadd.f32 %v232, %v298
    %v300 = vpop.f32.mrf.mxu0
    %301 = vdwg.mxu0
    %v302 = vxor.u32 %v296, 2147483648
    %v303 = vxor.u32 %v299, 2147483648
    %v304 = vmul.f32 %v302, 1.442695
    %v305 = vpow.pop %v304
    %v306 = vmul.f32 %v303, 1.442695
    %v307 = vpow.pop %v306
    %v308 = vadd.f32 %v305, 1.0
    %v309 = vadd.f32 %v307, 1.0
    %v310 = vrcp.pop %v308
    %v311 = vmul.f32 1.0, %v310
    %v312 = vrcp.pop %v309
    %v313 = vmul.f32 1.0, %v312
    %vm314 = vcmask 130048
    %315 = vst.msk [vmem:[#allocation7] sm:$0xff] %vm314, %v311
    %316 = vst.msk [vmem:[#allocation7 + $0x8] sm:$0xff] %vm314, %v313
    // Predicated region
    $region38: #{tpu_custom_call.1} parent=1 // pred_check
      _
    $region39: #{tpu_custom_call.1} parent=1 // pred_check_branch
      %318 = sbr.rel (0) target = $region41
    $region40: #{tpu_custom_call.1} parent=1 // pred_region
      %s320 = ssub.s32 256, 256
      %321 = vsyncadd [#allocation4], %s320
      %s322 = sshll.u32 [#allocation7], 4
      %s323 = int_to_ptr.vmem [resolvable:$true] %s322
      %328 = dma.vmem_to_hbm [thread:$0]  %s323, 256, %s7, [#allocation4], 128, 128, 8
    $region41: #{tpu_custom_call.1} parent=1 // pred_fallthru
      _
    // Predicated region
    $region42: #{tpu_custom_call.1} parent=1 // pred_check
      _
    $region43: #{tpu_custom_call.1} parent=1 // pred_check_branch
      %330 = sbr.rel (0) target = $region45
    $region44: #{tpu_custom_call.1} parent=1 // pred_region
      %331 = dma.done [#allocation4], 256
    $region45: #{tpu_custom_call.1} parent=1 // pred_fallthru
      _
    %332 = vsyncpa [#allocation3], 1
    %333 = vsyncpa [#allocation6], 1
    %334 = vsyncpa [#allocation4], 1

</llo_original>
